<compile_context>
chip_gen: v5e
topology: v5e:2x2
jax: 0.10.0
libtpu: 0.0.40
codegen_flags: <defaults>
</compile_context>

<pallas_src>
import dataclasses
from typing import Dict, Tuple

import numpy as np

import jax
import jax.numpy as jnp
from jax.experimental import pallas as pl
from jax.experimental.pallas import tpu as pltpu


def _round_up(x, m):
    return (x + m - 1) // m * m


def _vmem_budget_bytes():
    """Usable VMEM budget, leaving headroom for compiler-internal scratch."""
    cap = 64 * 1024 * 1024                      # conservative fallback (v7x)
    try:
        cap = int(pltpu.get_tpu_info().vmem_capacity_bytes)
    except Exception:
        pass
    return int(min(cap - 8 * 1024 * 1024, int(cap * 0.8)))


# ---------------------------------------------------------------------------
# One-time packing (module init) -- NOT in the per-call forward path.
# ---------------------------------------------------------------------------
@dataclasses.dataclass(frozen=True)
class PackedInputParams:
    block_ids: Tuple[int, ...]
    sizes: Tuple[int, ...]
    embs: Tuple[int, ...]
    k_total: int
    n_total: int
    k_pad: int
    n_pad: int
    w_p: jax.Array          # (k_pad, n_pad) compute dtype, block-diagonal
    b_p: jax.Array          # (1, n_pad) float32, concatenated biases
    compute_dtype: jnp.dtype


def pack_base_input_params(params: Dict[int, Tuple[jax.Array, jax.Array]],
                           *, compute_dtype=jnp.bfloat16) -> PackedInputParams:
    """Pack per-block (W, bias) into a padded block-diagonal weight once."""
    block_ids = tuple(sorted(int(i) for i in params.keys()))
    sizes = tuple(int(params[b][0].shape[0]) for b in block_ids)
    embs = tuple(int(params[b][0].shape[1]) for b in block_ids)
    k_total, n_total = sum(sizes), sum(embs)
    k_pad, n_pad = _round_up(k_total, 128), _round_up(n_total, 128)

    # Host-side (numpy) packing: no on-device update-slice chains, done once.
    w_bd = np.zeros((k_pad, n_pad), np.float32)
    b_cat = np.zeros((1, n_pad), np.float32)
    k_off = n_off = 0
    for bid, sz, emb in zip(block_ids, sizes, embs):
        w, b = params[bid]
        w_bd[k_off:k_off + sz, n_off:n_off + emb] = np.asarray(w, np.float32)
        b_cat[:, n_off:n_off + emb] = np.asarray(b, np.float32).reshape(1, emb)
        k_off += sz
        n_off += emb

    return PackedInputParams(
        block_ids=block_ids, sizes=sizes, embs=embs,
        k_total=k_total, n_total=n_total, k_pad=k_pad, n_pad=n_pad,
        w_p=jnp.asarray(w_bd, compute_dtype),
        b_p=jnp.asarray(b_cat, jnp.float32),
        compute_dtype=jnp.dtype(compute_dtype))


# ---------------------------------------------------------------------------
# Kernel
# ---------------------------------------------------------------------------
def _fused_input_kernel(x_ref, w_ref, b_ref, o_ref):
    # Single MXU matmul per (batch, N) tile, f32 accumulate, lane-dense bias
    # add and full-tile store (no masked vst).
    acc = jnp.dot(x_ref[...], w_ref[...], preferred_element_type=jnp.float32)
    o_ref[...] = (acc + b_ref[...]).astype(o_ref.dtype)


def _choose_tiling(batch, k_pad, n_pad, x_item, w_item, out_item, budget):
    """Pick (tile_b, tn, n_tiles, vmem_need) under the VMEM budget."""
    # N tile: the largest 128-multiple divisor of n_pad whose resident weight
    # tile (with its buffer count) stays within ~60% of the budget.
    m = n_pad // 128
    tn = 128
    for d in range(m, 0, -1):
        if m % d:
            continue
        cand = d * 128
        bufs = 1 if cand == n_pad else 2
        if bufs * k_pad * cand * w_item <= int(0.6 * budget):
            tn = cand
            break
    n_tiles = n_pad // tn
    res_bufs = 1 if n_tiles == 1 else 2      # W/bias buffer count

    def need_for(t):
        return (res_bufs * k_pad * tn * w_item      # resident weight tile(s)
                + res_bufs * tn * 4                 # bias tile(s)
                + 2 * t * k_pad * x_item            # x, double-buffered
                + 2 * t * tn * out_item)            # out, double-buffered

    if batch <= 128:
        cands = [_round_up(batch, 8)]
    else:
        cap = _round_up(batch, 128)
        cands = [t for t in (1024, 512, 256, 128) if t <= cap] or [128]
    tile_b = cands[-1]
    for t in cands:                          # largest candidate that fits
        if need_for(t) <= budget:
            tile_b = t
            break
    return tile_b, tn, n_tiles, need_for(tile_b)


def base_input_forward(x_dict, packed: PackedInputParams, *,
                       out_dtype=jnp.float32):
    """Pallas equivalent of BaseInput.forward.

    x_dict : {block_id: (batch, size_b) or (size_b,) array}
    packed : PackedInputParams from pack_base_input_params (built once)
    returns: (batch, sum_b emb_b), column order == torch.cat(dim=1)
    """
    out_dtype = jnp.dtype(out_dtype)

    # ---- gather per-block inputs (cast to compute dtype, unsqueeze 1-D) ----
    xs = []
    for bid, sz in zip(packed.block_ids, packed.sizes):
        if bid not in x_dict:
            raise KeyError(f"block_id {bid} not in input data")
        v = jnp.asarray(x_dict[bid])
        if v.ndim == 1:                       # mirrors value.unsqueeze(0)
            v = v[None, :]
        if v.shape[1] != sz:
            raise ValueError(f"block {bid}: feature size mismatch")
        xs.append(v.astype(packed.compute_dtype))

    batch = max(v.shape[0] for v in xs)
    for i, v in enumerate(xs):
        if v.shape[0] != batch:
            if v.shape[0] == 1:               # broadcast unsqueezed 1-D blocks
                xs[i] = jnp.broadcast_to(v, (batch, v.shape[1]))
            else:
                raise ValueError("inconsistent batch size across blocks")

    # ---- tiling / VMEM budget ----------------------------------------------
    budget = _vmem_budget_bytes()
    tile_b, tn, n_tiles, need = _choose_tiling(
        batch, packed.k_pad, packed.n_pad,
        packed.compute_dtype.itemsize, packed.w_p.dtype.itemsize,
        out_dtype.itemsize, budget)
    b_pad = _round_up(batch, tile_b)

    # ---- x: single compute-dtype concat + one pad (no f32 intermediates) ---
    x_cat = jnp.concatenate(xs, axis=1) if len(xs) > 1 else xs[0]
    x_p = jnp.pad(x_cat, ((0, b_pad - batch),
                          (0, packed.k_pad - packed.k_total)))

    grid = (b_pad // tile_b, n_tiles)
    # Resident operands (constant index_map) only need a single buffer.
    res_buf = pl.Buffered(1) if n_tiles == 1 else pl.Buffered(2)

    flops = 2 * b_pad * packed.k_pad * packed.n_pad
    bytes_accessed = (x_p.size * x_p.dtype.itemsize
                      + packed.w_p.size * packed.w_p.dtype.itemsize
                      + packed.b_p.size * packed.b_p.dtype.itemsize
                      + b_pad * packed.n_pad * out_dtype.itemsize)
    vmem_limit = int(min(budget, max(int(need * 1.25) + (2 << 20), 32 << 20)))

    out_p = pl.pallas_call(
        _fused_input_kernel,
        out_shape=jax.ShapeDtypeStruct((b_pad, packed.n_pad), out_dtype),
        grid=grid,
        in_specs=[
            pl.BlockSpec((tile_b, packed.k_pad), lambda i, j: (i, 0)),
            pl.BlockSpec((packed.k_pad, tn), lambda i, j: (0, j),
                         pipeline_mode=res_buf),
            pl.BlockSpec((1, tn), lambda i, j: (0, j),
                         pipeline_mode=res_buf),
        ],
        out_specs=pl.BlockSpec((tile_b, tn), lambda i, j: (i, j)),
        compiler_params=pltpu.CompilerParams(
            dimension_semantics=("parallel", "parallel"),
            vmem_limit_bytes=vmem_limit),
        cost_estimate=pl.CostEstimate(
            flops=flops, transcendentals=0, bytes_accessed=bytes_accessed),
    )(x_p, packed.w_p, packed.b_p)

    # Strip batch/feature padding; columns already match torch.cat(dim=1).
    return out_p[:batch, :packed.n_total]


# ---------------------------------------------------------------------------
# Synthetic params / pure-JAX reference / self-test
# ---------------------------------------------------------------------------
def init_params(block_config, key):
    """Deterministic synthetic parameters; shapes follow (size, emb_size)."""
    params = {}
    for bid, (size, emb) in sorted(block_config.items()):
        kw, kb = jax.random.split(jax.random.fold_in(key, bid))
        w = jax.random.normal(kw, (size, emb), dtype=jnp.float32) * 0.02
        b = jax.random.normal(kb, (1, emb), dtype=jnp.float32) * 0.02
        params[bid] = (w, b)
    return params


def reference_forward(x_dict, params, *, compute_dtype=jnp.bfloat16):
    """Pure-JAX reference (same bf16-operand / f32-accumulate numerics)."""
    block_ids = sorted(int(i) for i in x_dict.keys())
    xs = []
    for bid in block_ids:
        v = jnp.asarray(x_dict[bid], dtype=jnp.float32)
        if v.ndim == 1:
            v = v[None, :]
        xs.append(v)
    batch = max(v.shape[0] for v in xs)
    outs = []
    for v, bid in zip(xs, block_ids):
        if v.shape[0] != batch:
            v = jnp.broadcast_to(v, (batch, v.shape[1]))
        w, b = params[bid]
        y = jnp.dot(v.astype(compute_dtype), w.astype(compute_dtype),
                    preferred_element_type=jnp.float32)
        outs.append(y + jnp.asarray(b, jnp.float32))
    return jnp.concatenate(outs, axis=1)


if __name__ == "__main__":
    key = jax.random.PRNGKey(0)

    # block_config: {block_id: (size, emb_size)}
    block_config = {0: (16, 32), 1: (8, 16), 2: (32, 64)}
    batch = 2

    params = init_params(block_config, key)
    packed = pack_base_input_params(params)    # packed ONCE, reused per call

    # deterministic example inputs; block 1 is 1-D to exercise the unsqueeze
    # path (the wrapper broadcasts it to the common batch).
    k0, k1, k2 = jax.random.split(jax.random.fold_in(key, 123), 3)
    x = {
        0: jax.random.normal(k0, (batch, block_config[0][0]), dtype=jnp.float32),
        1: jax.random.normal(k1, (block_config[1][0],), dtype=jnp.float32),
        2: jax.random.normal(k2, (batch, block_config[2][0]), dtype=jnp.float32),
    }

    out = base_input_forward(x, packed)
    out = jax.block_until_ready(out)

    ref = reference_forward(x, params)
    total_emb = sum(e for _, e in block_config.values())
    assert out.shape == (batch, total_emb), out.shape
    assert jnp.allclose(out, ref, atol=1e-4, rtol=1e-4), (
        float(jnp.max(jnp.abs(out - ref))))

    print("KERNEL_OK")
</pallas_src>

<mosaic_0001>
module attributes {stable_mosaic.version = 11 : i64} {
  func.func @_fused_input_kernel(%arg0: i32, %arg1: i32, %arg2: memref<8x128xbf16, #tpu.memory_space<vmem>>, %arg3: memref<128x128xbf16, #tpu.memory_space<vmem>>, %arg4: memref<1x128xf32, #tpu.memory_space<vmem>>, %arg5: memref<8x128xf32, #tpu.memory_space<vmem>>) attributes {dimension_semantics = [#tpu.dimension_semantics<parallel>, #tpu.dimension_semantics<parallel>], iteration_bounds = array<i64: 1, 1>, scalar_prefetch = 0 : i64, scratch_operands = 0 : i64, tpu.core_type = #tpu.core_type<tc>, window_params = [{transform_indices = @transform_0, window_bounds = array<i64: 8, 128>}, {pipeline_mode = #tpu.pipeline_mode<synchronous>, transform_indices = @transform_1, window_bounds = array<i64: 128, 128>}, {pipeline_mode = #tpu.pipeline_mode<synchronous>, transform_indices = @transform_2, window_bounds = array<i64: 1, 128>}, {transform_indices = @transform_3, window_bounds = array<i64: 8, 128>}]} {
    %c0 = arith.constant 0 : index
    %c0_0 = arith.constant 0 : index
    %0 = vector.load %arg2[%c0, %c0_0] : memref<8x128xbf16, #tpu.memory_space<vmem>>, vector<8x128xbf16>
    %c0_1 = arith.constant 0 : index
    %c0_2 = arith.constant 0 : index
    %1 = vector.load %arg3[%c0_1, %c0_2] : memref<128x128xbf16, #tpu.memory_space<vmem>>, vector<128x128xbf16>
    %cst = arith.constant dense<0.000000e+00> : vector<8x128xf32>
    %2 = tpu.matmul %0, %1, %cst {dimension_numbers = #tpu.dot_dimension_numbers<[1], [0], [0], [1], [0, 0, 1, 1], [], []>} : vector<8x128xbf16>, vector<128x128xbf16>, vector<8x128xf32> -> vector<8x128xf32>
    %c0_3 = arith.constant 0 : index
    %c0_4 = arith.constant 0 : index
    %3 = vector.load %arg4[%c0_3, %c0_4] : memref<1x128xf32, #tpu.memory_space<vmem>>, vector<1x128xf32>
    %4 = vector.broadcast %3 : vector<1x128xf32> to vector<8x128xf32>
    %5 = arith.addf %2, %4 : vector<8x128xf32>
    %c0_5 = arith.constant 0 : index
    %c0_6 = arith.constant 0 : index
    %6 = vector.load %arg5[%c0_5, %c0_6] : memref<8x128xf32, #tpu.memory_space<vmem>>, vector<8x128xf32>
    tpu.vector_store %arg5[%c0_5, %c0_6], %5 {strides = array<i32>} : memref<8x128xf32, #tpu.memory_space<vmem>>, vector<8x128xf32>,
    return
  }
  func.func @transform_0(%arg0: i32, %arg1: i32) -> (i32, i32) {
    %c0_i32 = arith.constant 0 : i32
    %c0_i32_0 = arith.constant 0 : i32
    return %arg0, %c0_i32 : i32, i32
  }
  func.func @transform_1(%arg0: i32, %arg1: i32) -> (i32, i32) {
    %c0_i32 = arith.constant 0 : i32
    %c0_i32_0 = arith.constant 0 : i32
    return %c0_i32, %arg1 : i32, i32
  }
  func.func @transform_2(%arg0: i32, %arg1: i32) -> (i32, i32) {
    %c0_i32 = arith.constant 0 : i32
    %c0_i32_0 = arith.constant 0 : i32
    return %c0_i32, %arg1 : i32, i32
  }
  func.func @transform_3(%arg0: i32, %arg1: i32) -> (i32, i32) {
    %c0_i32 = arith.constant 0 : i32
    return %arg0, %arg1 : i32, i32
  }
}

</mosaic_0001>

<llo_original>
// kernel: tpu_custom_call.1
$region0: #{tpu_custom_call.1}
  #allocation0 [shape = 'u32[]', space=smem, size = 0x4, offset = 0x4, fixed_abs, tag = 'smem constant byte address 0x4 - core index']
  #allocation1 [shape = 'u32[72,128]{1,0:T(1,128)}', space=vmem, size = 0x9000, scoped, tag = 'internal scratch']
  %s0 = inlined_call_operand.hbm [shape: bf16[8,128], index: 0, kind: input, shape index: {}]
  %s1 = inlined_call_operand.hbm [shape: bf16[128,128], index: 1, kind: input, shape index: {}]
  %s2 = inlined_call_operand.vmem [shape: f32[1,128], index: 2, kind: input, shape index: {}]
  %s3 = inlined_call_operand.hbm [shape: f32[8,128], index: 3, kind: output, shape index: {}]
  %s4 = sld [smem:[#allocation0]]
  $region30: #{tpu_custom_call.1} parent=0
    _
  %s6 = ssub.s32 1, %s4
  %s7 = scalar_select 0, %s6, %s4
  $region1: #{tpu_custom_call.1} parent=0
    #allocation2 [shape = 'u8[2048]{0}', space=vmem, size = 0x800, scoped, tag = 'input window, operand 0, single buffered']
    #allocation3 [shape = 's32[1]{0}', space=sflag, size = 0x4, scoped, tag = 'scoped memory for tpu_custom_call.1']
    #allocation4 [shape = 's32[1]{0}', space=sflag, size = 0x4, scoped, tag = 'scoped memory for tpu_custom_call.1']
    #allocation5 [shape = 'u8[32768]{0}', space=vmem, size = 0x8000, scoped, tag = 'input window, operand 1, single buffered']
    #allocation6 [shape = 's32[1]{0}', space=sflag, size = 0x4, scoped, tag = 'scoped memory for tpu_custom_call.1']
    #allocation7 [shape = 'u8[4096]{0}', space=vmem, size = 0x1000, scoped, tag = 'output window, operand 0, single buffered']
    %8 = vsyncpa [#allocation3], 0
    %9 = vsyncpa [#allocation6], 0
    %10 = vsyncpa [#allocation4], 0
    // Predicated region
    $region2: #{tpu_custom_call.1} parent=1 // pred_check
      _
    $region3: #{tpu_custom_call.1} parent=1 // pred_check_branch
      %12 = sbr.rel (0) target = $region5
    $region4: #{tpu_custom_call.1} parent=1 // pred_region
      %14 = vsyncadd [#allocation3], 0
      %s16 = sshll.u32 %s0, 4
      %s17 = int_to_ptr.hbm [resolvable:$true] %s16
      %s18 = sshll.u32 [#allocation2], 4
      %s19 = int_to_ptr.vmem [resolvable:$true] %s18
      %21 = dma.hbm_to_vmem [thread:$0]  %s17, 64, %s19, [#allocation3]
    $region5: #{tpu_custom_call.1} parent=1 // pred_fallthru
      _
    // Predicated region
    $region6: #{tpu_custom_call.1} parent=1 // pred_check
      _
    $region7: #{tpu_custom_call.1} parent=1 // pred_check_branch
      %23 = sbr.rel (0) target = $region9
    $region8: #{tpu_custom_call.1} parent=1 // pred_region
      %25 = vsyncadd [#allocation6], 0
      %s26 = sshll.u32 %s1, 4
      %s27 = int_to_ptr.hbm [resolvable:$true] %s26
      %s28 = sshll.u32 [#allocation5], 4
      %s29 = int_to_ptr.vmem [resolvable:$true] %s28
      %34 = dma.hbm_to_vmem [thread:$0]  %s27, 1024, %s29, [#allocation6], 64, 64, 4
    $region9: #{tpu_custom_call.1} parent=1 // pred_fallthru
      _
    // Predicated region
    $region10: #{tpu_custom_call.1} parent=1 // pred_check
      _
    $region11: #{tpu_custom_call.1} parent=1 // pred_check_branch
      %36 = sbr.rel (0) target = $region13
    $region12: #{tpu_custom_call.1} parent=1 // pred_region
      _
    $region13: #{tpu_custom_call.1} parent=1 // pred_fallthru
      _
    // Predicated region
    $region14: #{tpu_custom_call.1} parent=1 // pred_check
      _
    $region15: #{tpu_custom_call.1} parent=1 // pred_check_branch
      %38 = sbr.rel (0) target = $region17
    $region16: #{tpu_custom_call.1} parent=1 // pred_region
      %40 = dma.done [#allocation3], 64
    $region17: #{tpu_custom_call.1} parent=1 // pred_fallthru
      _
    // Predicated region
    $region18: #{tpu_custom_call.1} parent=1 // pred_check
      _
    $region19: #{tpu_custom_call.1} parent=1 // pred_check_branch
      %42 = sbr.rel (0) target = $region21
    $region20: #{tpu_custom_call.1} parent=1 // pred_region
      %44 = dma.done [#allocation6], 1024
    $region21: #{tpu_custom_call.1} parent=1 // pred_fallthru
      _
    %v45 = vld [vmem:[#allocation2] sm:$0xf]
    %v46 = vld [vmem:[#allocation5] sm:$0xf]
    %v47 = vld [vmem:[#allocation5 + $0x4] sm:$0xf]
    %v48 = vld [vmem:[#allocation5 + $0x8] sm:$0xf]
    %v49 = vld [vmem:[#allocation5 + $0xc] sm:$0xf]
    %v50 = vld [vmem:[#allocation5 + $0x10] sm:$0xf]
    %v51 = vld [vmem:[#allocation5 + $0x14] sm:$0xf]
    %v52 = vld [vmem:[#allocation5 + $0x18] sm:$0xf]
    %v53 = vld [vmem:[#allocation5 + $0x1c] sm:$0xf]
    %v54 = vld [vmem:[#allocation5 + $0x20] sm:$0xf]
    %v55 = vld [vmem:[#allocation5 + $0x24] sm:$0xf]
    %v56 = vld [vmem:[#allocation5 + $0x28] sm:$0xf]
    %v57 = vld [vmem:[#allocation5 + $0x2c] sm:$0xf]
    %v58 = vld [vmem:[#allocation5 + $0x30] sm:$0xf]
    %v59 = vld [vmem:[#allocation5 + $0x34] sm:$0xf]
    %v60 = vld [vmem:[#allocation5 + $0x38] sm:$0xf]
    %v61 = vld [vmem:[#allocation5 + $0x3c] sm:$0xf]
    %v62 = vld [vmem:[%s2] sm:$0x1]
    %v64 = vperm.slane %v62, 0
    %v82 = vunpack.c.l.b16 %v46
    %v83 = vunpack.c.l.b16 %v47
    %v84 = vunpack.c.l.b16 %v48
    %v85 = vunpack.c.l.b16 %v49
    %v86 = vunpack.c.l.b16 %v50
    %v87 = vunpack.c.l.b16 %v51
    %v88 = vunpack.c.l.b16 %v52
    %v89 = vunpack.c.l.b16 %v53
    %v90 = vunpack.c.l.b16 %v54
    %v91 = vunpack.c.l.b16 %v55
    %v92 = vunpack.c.l.b16 %v56
    %v93 = vunpack.c.l.b16 %v57
    %v94 = vunpack.c.l.b16 %v58
    %v95 = vunpack.c.l.b16 %v59
    %v96 = vunpack.c.l.b16 %v60
    %v97 = vunpack.c.l.b16 %v61
    %v98 = vpack.c.b16 %v83, %v82
    %v99 = vpack.c.b16 %v85, %v84
    %v100 = vpack.c.b16 %v87, %v86
    %v101 = vpack.c.b16 %v89, %v88
    %v102 = vpack.c.b16 %v91, %v90
    %v103 = vpack.c.b16 %v93, %v92
    %v104 = vpack.c.b16 %v95, %v94
    %v105 = vpack.c.b16 %v97, %v96
    %114 = vmatpush.bf16.msra.mxu0 %v105
    %115 = vmatpush.bf16.msra.mxu0 %v104
    %116 = vmatpush.bf16.msra.mxu0 %v103
    %117 = vmatpush.bf16.msra.mxu0 %v102
    %118 = vmatpush.bf16.msra.mxu0 %v101
    %119 = vmatpush.bf16.msra.mxu0 %v100
    %120 = vmatpush.bf16.msra.mxu0 %v99
    %121 = vmatpush.bf16.msra.mxu0 %v98
    %122 = vmatmul.bf16.gmra.mxu0 %v45
    %v123 = vpop.f32.mrf.mxu0
    %v124 = vadd.f32 %v64, %v123
    %v125 = vpop.f32.mrf.mxu0
    %126 = vdwg.mxu0
    %127 = vst [vmem:[#allocation7] sm:$0xff] %v124
    // Predicated region
    $region22: #{tpu_custom_call.1} parent=1 // pred_check
      _
    $region23: #{tpu_custom_call.1} parent=1 // pred_check_branch
      %129 = sbr.rel (0) target = $region25
    $region24: #{tpu_custom_call.1} parent=1 // pred_region
      %131 = vsyncadd [#allocation4], 0
      %s133 = sshll.u32 [#allocation7], 4
      %s134 = int_to_ptr.vmem [resolvable:$true] %s133
      %s135 = sshll.u32 %s3, 4
      %s136 = int_to_ptr.hbm [resolvable:$true] %s135
      %138 = dma.vmem_to_hbm [thread:$0]  %s134, 128, %s136, [#allocation4]
    $region25: #{tpu_custom_call.1} parent=1 // pred_fallthru
      _
    // Predicated region
    $region26: #{tpu_custom_call.1} parent=1 // pred_check
      _
    $region27: #{tpu_custom_call.1} parent=1 // pred_check_branch
      %140 = sbr.rel (0) target = $region29
    $region28: #{tpu_custom_call.1} parent=1 // pred_region
      %142 = dma.done [#allocation4], 128
    $region29: #{tpu_custom_call.1} parent=1 // pred_fallthru
      _
    %143 = vsyncpa [#allocation3], 1
    %144 = vsyncpa [#allocation6], 1
    %145 = vsyncpa [#allocation4], 1

</llo_original>
